<compile_context>
chip_gen: v5e
topology: v5e:2x2
jax: 0.10.0
libtpu: 0.0.40
codegen_flags: <defaults>
</compile_context>

<pallas_src>
import jax
import jax.numpy as jnp
from jax.experimental import pallas as pl
from jax.experimental.pallas import tpu as pltpu


def _mask_attention_body(x_ref, w_ref, mask_ref, out_ref, scores_ref):
    # x_ref:      (bB, L, D)  inputs block (native dtype)
    # w_ref:      (1, D)      Linear(D, 1, bias=False).weight (VMEM-resident)
    # mask_ref:   (bB, L)     mask_nonzero block (0 => masked out), or None
    # out_ref:    (bB, D)     attention-pooled outputs block
    # scores_ref: (bB, L)     softmax attention weights block
    x = x_ref[...]                                   # (bB, L, D) native dtype
    w = w_ref[...].astype(x.dtype)                   # (1, D)

    # Linear(D -> 1, bias=False): multiply in native dtype (VPU), accumulate the
    # lane reduction in f32.
    scores = jnp.sum((x * w[None, :, :]).astype(jnp.float32), axis=-1)   # (bB, L)

    if mask_ref is not None:
        # masked_fill(mask_nonzero == 0, -inf)
        scores = jnp.where(mask_ref[...] == 0, -jnp.inf, scores)

    # Numerically stable softmax over the sequence axis (f32).
    m = jnp.max(scores, axis=-1, keepdims=True)      # (bB, 1)
    e = jnp.exp(scores - m)                          # (bB, L)
    denom = jnp.sum(e, axis=-1, keepdims=True)       # (bB, 1)
    # Approximate reciprocal runs on the EUP (frees the VALU slot); one
    # Newton-Raphson step on the tiny (bB, 1) vector restores full f32 accuracy.
    inv = pl.reciprocal(denom, approx=True)
    inv = inv * (2.0 - denom * inv)
    probs = e * inv                                  # (bB, L)

    # outputs = (B, 1, L) @ (B, L, D): weighted sum over L.
    # Multiply in native dtype, accumulate the sublane reduction in f32.
    weighted = probs.astype(x.dtype)[:, :, None] * x                     # (bB, L, D)
    out = jnp.sum(weighted.astype(jnp.float32), axis=1)                  # (bB, D)

    out_ref[...] = out.astype(out_ref.dtype)
    scores_ref[...] = probs.astype(scores_ref.dtype)


def _mask_attention_kernel_masked(x_ref, w_ref, mask_ref, out_ref, scores_ref):
    _mask_attention_body(x_ref, w_ref, mask_ref, out_ref, scores_ref)


def _mask_attention_kernel_nomask(x_ref, w_ref, out_ref, scores_ref):
    _mask_attention_body(x_ref, w_ref, None, out_ref, scores_ref)


def mask_attention_forward(x, w, mask_nonzero=None, *, block_b=None):
    """x: (B, L, D), w: (1, D) Linear weight, mask_nonzero: (B, L) or None.

    Returns (outputs (B, D), scores (B, 1, L)) matching the PyTorch module.
    """
    B, L, D = x.shape
    assert w.shape == (1, D), w.shape
    has_mask = mask_nonzero is not None

    # ---- batch tile selection ----------------------------------------------
    # Target <= ~4 MiB for the f32 working copy of one x block: with double
    # buffering plus in-kernel temporaries this stays inside the scoped-VMEM
    # defaults of every generation (16 MiB v5e, 32 MiB v6e/v7x; 64 MiB physical
    # on v7x) while being large enough to amortize per-grid-step overhead.
    itemsize = jnp.dtype(x.dtype).itemsize
    row_bytes = L * D * max(itemsize, 4)           # f32 worst case for temporaries
    if block_b is None:
        rows = max(1, (4 << 20) // row_bytes)
        block_b = B if rows >= B else max(8, (rows // 8) * 8)
    else:
        block_b = min(block_b, B)
        if block_b < B:
            # Keep the second-to-last dim of the 2-D blocks a multiple of 8.
            block_b = max(8, (block_b // 8) * 8)

    num_blocks = -(-B // block_b)
    B_pad = num_blocks * block_b

    # ---- batch padding so the grid divides evenly ---------------------------
    x_p = x if B_pad == B else jnp.pad(x, ((0, B_pad - B), (0, 0), (0, 0)))
    if has_mask:
        mask_p = mask_nonzero.astype(jnp.float32)
        if B_pad != B:
            # Padded rows get an all-ones mask so they stay NaN-free (sliced off below).
            mask_p = jnp.pad(mask_p, ((0, B_pad - B), (0, 0)), constant_values=1.0)

    # ---- explicit VMEM budget ------------------------------------------------
    x_block_bytes = block_b * L * D * itemsize
    f32_block_bytes = block_b * L * D * 4
    small_bytes = (block_b * (L + D) + D) * 4
    est = 2 * x_block_bytes + 3 * f32_block_bytes + 4 * small_bytes
    vmem_limit = int(min(max(4 * est, 8 << 20), 32 << 20))

    grid = (B_pad // block_b,)
    in_specs = [
        pl.BlockSpec((block_b, L, D), lambda i: (i, 0, 0)),
        pl.BlockSpec((1, D), lambda i: (0, 0)),   # constant index -> weight stays resident
    ]
    inputs = [x_p, w]
    if has_mask:
        in_specs.append(pl.BlockSpec((block_b, L), lambda i: (i, 0)))
        inputs.append(mask_p)
        kernel = _mask_attention_kernel_masked
    else:
        kernel = _mask_attention_kernel_nomask

    out, scores = pl.pallas_call(
        kernel,
        out_shape=(
            jax.ShapeDtypeStruct((B_pad, D), x.dtype),
            jax.ShapeDtypeStruct((B_pad, L), x.dtype),
        ),
        grid=grid,
        in_specs=in_specs,
        out_specs=(
            pl.BlockSpec((block_b, D), lambda i: (i, 0)),
            pl.BlockSpec((block_b, L), lambda i: (i, 0)),
        ),
        compiler_params=pltpu.CompilerParams(
            dimension_semantics=("parallel",),   # megacore split on v7x; no-op on v5e/v6e
            vmem_limit_bytes=vmem_limit,
        ),
    )(*inputs)

    if B_pad != B:
        out = out[:B]
        scores = scores[:B]

    # PyTorch returns the unsqueezed scores: (B, 1, L).
    return out, scores[:, None, :]


def reference_forward(x, w, mask_nonzero=None):
    """Pure-JAX reference (same math as the PyTorch module)."""
    scores = jnp.einsum("bld,d->bl", x.astype(jnp.float32), w[0].astype(jnp.float32))
    if mask_nonzero is not None:
        scores = jnp.where(mask_nonzero == 0, -jnp.inf, scores)
    probs = jax.nn.softmax(scores, axis=-1)
    out = jnp.einsum("bl,bld->bd", probs, x.astype(jnp.float32))
    return out.astype(x.dtype), probs[:, None, :].astype(x.dtype)


if __name__ == "__main__":
    # Shapes implied by the module: inputs (batch, seq, hidden) = (2, 8, 32).
    B, L, D = 2, 8, 32
    key = jax.random.PRNGKey(0)
    kx, kw, km = jax.random.split(key, 3)

    x = jax.random.normal(kx, (B, L, D), jnp.float32)
    # nn.Linear(D, 1, bias=False) init: U(-1/sqrt(D), 1/sqrt(D)); weight shape (1, D).
    bound = 1.0 / (D ** 0.5)
    w = jax.random.uniform(kw, (1, D), jnp.float32, minval=-bound, maxval=bound)
    # 0/1 mask with at least one valid (nonzero) position per row (a fully-masked
    # row gives NaN, identical to the PyTorch module).
    mask = (jax.random.uniform(km, (B, L)) > 0.3).astype(jnp.float32)
    mask = mask.at[:, 0].set(1.0)

    out, scores = mask_attention_forward(x, w, mask)
    jax.block_until_ready((out, scores))

    ref_out, ref_scores = reference_forward(x, w, mask)
    assert out.shape == (B, D), out.shape
    assert scores.shape == (B, 1, L), scores.shape
    assert jnp.allclose(out, ref_out, atol=1e-4, rtol=1e-4), "outputs mismatch"
    assert jnp.allclose(scores, ref_scores, atol=1e-4, rtol=1e-4), "scores mismatch"

    # Also exercise the specialized mask_nonzero=None path (no mask DMA).
    out2, scores2 = mask_attention_forward(x, w, None)
    jax.block_until_ready((out2, scores2))
    ref_out2, ref_scores2 = reference_forward(x, w, None)
    assert jnp.allclose(out2, ref_out2, atol=1e-4, rtol=1e-4), "outputs mismatch (no mask)"
    assert jnp.allclose(scores2, ref_scores2, atol=1e-4, rtol=1e-4), "scores mismatch (no mask)"

    print("KERNEL_OK")
</pallas_src>

<mosaic_0001>
module attributes {stable_mosaic.version = 11 : i64} {
  func.func @_mask_attention_kernel_masked(%arg0: i32, %arg1: memref<2x8x32xf32, #tpu.memory_space<vmem>>, %arg2: memref<1x32xf32, #tpu.memory_space<vmem>>, %arg3: memref<2x8xf32, #tpu.memory_space<vmem>>, %arg4: memref<2x32xf32, #tpu.memory_space<vmem>>, %arg5: memref<2x8xf32, #tpu.memory_space<vmem>>) attributes {dimension_semantics = [#tpu.dimension_semantics<parallel>], iteration_bounds = array<i64: 1>, scalar_prefetch = 0 : i64, scratch_operands = 0 : i64, tpu.core_type = #tpu.core_type<tc>, window_params = [{transform_indices = @transform_0, window_bounds = array<i64: 2, 8, 32>}, {pipeline_mode = #tpu.pipeline_mode<synchronous>, transform_indices = @transform_1, window_bounds = array<i64: 1, 32>}, {transform_indices = @transform_2, window_bounds = array<i64: 2, 8>}, {transform_indices = @transform_3, window_bounds = array<i64: 2, 32>}, {transform_indices = @transform_4, window_bounds = array<i64: 2, 8>}]} {
    %c0 = arith.constant 0 : index
    %c0_0 = arith.constant 0 : index
    %c0_1 = arith.constant 0 : index
    %0 = vector.load %arg1[%c0, %c0_0, %c0_1] : memref<2x8x32xf32, #tpu.memory_space<vmem>>, vector<2x8x32xf32>
    %c0_2 = arith.constant 0 : index
    %c0_3 = arith.constant 0 : index
    %1 = vector.load %arg2[%c0_2, %c0_3] : memref<1x32xf32, #tpu.memory_space<vmem>>, vector<1x32xf32>
    %2 = vector.shape_cast %1 : vector<1x32xf32> to vector<1x1x32xf32>
    %3 = vector.broadcast %2 : vector<1x1x32xf32> to vector<2x8x32xf32>
    %4 = arith.mulf %0, %3 : vector<2x8x32xf32>
    %cst = arith.constant dense<0.000000e+00> : vector<2x8xf32>
    %5 = vector.multi_reduction <add>, %4, %cst [2] : vector<2x8x32xf32> to vector<2x8xf32>
    %c0_4 = arith.constant 0 : index
    %c0_5 = arith.constant 0 : index
    %6 = vector.load %arg3[%c0_4, %c0_5] : memref<2x8xf32, #tpu.memory_space<vmem>>, vector<2x8xf32>
    %cst_6 = arith.constant 0.000000e+00 : f32
    %7 = vector.broadcast %cst_6 : f32 to vector<2x8xf32>
    %8 = arith.cmpf oeq, %6, %7 : vector<2x8xf32>
    %cst_7 = arith.constant 0xFF800000 : f32
    %9 = vector.broadcast %cst_7 : f32 to vector<2x8xf32>
    %10 = arith.select %8, %9, %5 : vector<2x8xi1>, vector<2x8xf32>
    %cst_8 = arith.constant dense<0xFF800000> : vector<2xf32>
    %11 = vector.multi_reduction <maximumf>, %10, %cst_8 [1] : vector<2x8xf32> to vector<2xf32>
    %12 = vector.shape_cast %11 : vector<2xf32> to vector<2x1xf32>
    %13 = vector.broadcast %12 : vector<2x1xf32> to vector<2x8xf32>
    %14 = arith.subf %10, %13 : vector<2x8xf32>
    %15 = math.exp %14 : vector<2x8xf32>
    %cst_9 = arith.constant dense<0.000000e+00> : vector<2xf32>
    %16 = vector.multi_reduction <add>, %15, %cst_9 [1] : vector<2x8xf32> to vector<2xf32>
    %17 = vector.shape_cast %16 : vector<2xf32> to vector<2x1xf32>
    %18 = tpu.reciprocal %17 {approx = true} : vector<2x1xf32> -> vector<2x1xf32>
    %19 = arith.mulf %17, %18 : vector<2x1xf32>
    %cst_10 = arith.constant 2.000000e+00 : f32
    %20 = vector.broadcast %cst_10 : f32 to vector<2x1xf32>
    %21 = arith.subf %20, %19 : vector<2x1xf32>
    %22 = arith.mulf %18, %21 : vector<2x1xf32>
    %23 = vector.broadcast %22 : vector<2x1xf32> to vector<2x8xf32>
    %24 = arith.mulf %15, %23 : vector<2x8xf32>
    %25 = vector.shape_cast %24 : vector<2x8xf32> to vector<2x8x1xf32>
    %26 = vector.broadcast %25 : vector<2x8x1xf32> to vector<2x8x32xf32>
    %27 = arith.mulf %26, %0 : vector<2x8x32xf32>
    %cst_11 = arith.constant dense<0.000000e+00> : vector<2x32xf32>
    %28 = vector.multi_reduction <add>, %27, %cst_11 [1] : vector<2x8x32xf32> to vector<2x32xf32>
    %c0_12 = arith.constant 0 : index
    %c0_13 = arith.constant 0 : index
    %29 = vector.load %arg4[%c0_12, %c0_13] : memref<2x32xf32, #tpu.memory_space<vmem>>, vector<2x32xf32>
    tpu.vector_store %arg4[%c0_12, %c0_13], %28 {strides = array<i32>} : memref<2x32xf32, #tpu.memory_space<vmem>>, vector<2x32xf32>,
    %c0_14 = arith.constant 0 : index
    %c0_15 = arith.constant 0 : index
    %30 = vector.load %arg5[%c0_14, %c0_15] : memref<2x8xf32, #tpu.memory_space<vmem>>, vector<2x8xf32>
    tpu.vector_store %arg5[%c0_14, %c0_15], %24 {strides = array<i32>} : memref<2x8xf32, #tpu.memory_space<vmem>>, vector<2x8xf32>,
    return
  }
  func.func @transform_0(%arg0: i32) -> (i32, i32, i32) {
    %c0_i32 = arith.constant 0 : i32
    %c0_i32_0 = arith.constant 0 : i32
    %c0_i32_1 = arith.constant 0 : i32
    return %arg0, %c0_i32, %c0_i32_0 : i32, i32, i32
  }
  func.func @transform_1(%arg0: i32) -> (i32, i32) {
    %c0_i32 = arith.constant 0 : i32
    %c0_i32_0 = arith.constant 0 : i32
    %c0_i32_1 = arith.constant 0 : i32
    return %c0_i32, %c0_i32_0 : i32, i32
  }
  func.func @transform_2(%arg0: i32) -> (i32, i32) {
    %c0_i32 = arith.constant 0 : i32
    %c0_i32_0 = arith.constant 0 : i32
    return %arg0, %c0_i32 : i32, i32
  }
  func.func @transform_3(%arg0: i32) -> (i32, i32) {
    %c0_i32 = arith.constant 0 : i32
    %c0_i32_0 = arith.constant 0 : i32
    return %arg0, %c0_i32 : i32, i32
  }
  func.func @transform_4(%arg0: i32) -> (i32, i32) {
    %c0_i32 = arith.constant 0 : i32
    %c0_i32_0 = arith.constant 0 : i32
    return %arg0, %c0_i32 : i32, i32
  }
}

</mosaic_0001>

<llo_original>
// kernel: tpu_custom_call.1
$region0: #{tpu_custom_call.1}
  #allocation0 [shape = 'u32[]', space=smem, size = 0x4, offset = 0x4, fixed_abs, tag = 'smem constant byte address 0x4 - core index']
  #allocation1 [shape = 'u32[72,128]{1,0:T(1,128)}', space=vmem, size = 0x9000, scoped, tag = 'internal scratch']
  %s0 = inlined_call_operand.hbm [shape: f32[2,8,32], index: 0, kind: input, shape index: {}]
  %s1 = inlined_call_operand.hbm [shape: f32[1,32], index: 1, kind: input, shape index: {}]
  %s2 = inlined_call_operand.hbm [shape: f32[2,8], index: 2, kind: input, shape index: {}]
  %s3 = inlined_call_operand.hbm [shape: f32[2,32], index: 3, kind: output, shape index: {0}]
  %s4 = inlined_call_operand.hbm [shape: f32[2,8], index: 4, kind: output, shape index: {1}]
  %5 = xla_tuple %s3, %s4
  %s6 = sld [smem:[#allocation0]]
  $region42: #{tpu_custom_call.1} parent=0
    _
  %s8 = ssub.s32 1, %s6
  %s9 = scalar_select 0, %s8, %s6
  $region1: #{tpu_custom_call.1} parent=0
    #allocation2 [shape = 'u8[8192]{0}', space=vmem, size = 0x2000, scoped, tag = 'input window, operand 0, single buffered']
    #allocation3 [shape = 's32[1]{0}', space=sflag, size = 0x4, scoped, tag = 'scoped memory for tpu_custom_call.1']
    #allocation4 [shape = 's32[1]{0}', space=sflag, size = 0x4, scoped, tag = 'scoped memory for tpu_custom_call.1']
    #allocation5 [shape = 'u8[512]{0}', space=vmem, size = 0x400, scoped, tag = 'input window, operand 1, single buffered']
    #allocation6 [shape = 's32[1]{0}', space=sflag, size = 0x4, scoped, tag = 'scoped memory for tpu_custom_call.1']
    #allocation7 [shape = 'u8[1024]{0}', space=vmem, size = 0x400, scoped, tag = 'input window, operand 2, single buffered']
    #allocation8 [shape = 'u8[1024]{0}', space=vmem, size = 0x400, scoped, tag = 'output window, operand 0, single buffered']
    #allocation9 [shape = 'u8[1024]{0}', space=vmem, size = 0x400, scoped, tag = 'output window, operand 1, single buffered']
    #allocation10 [shape = 's32[1]{0}', space=sflag, size = 0x4, scoped, tag = 'scoped memory for tpu_custom_call.1']
    %10 = vsyncpa [#allocation3], 0
    %11 = vsyncpa [#allocation6], 0
    %12 = vsyncpa [#allocation4], 0
    %13 = vsyncpa [#allocation10], 0
    // Predicated region
    $region2: #{tpu_custom_call.1} parent=1 // pred_check
      _
    $region3: #{tpu_custom_call.1} parent=1 // pred_check_branch
      %15 = sbr.rel (0) target = $region5
    $region4: #{tpu_custom_call.1} parent=1 // pred_region
      %17 = vsyncadd [#allocation3], 0
      %s18 = sshll.u32 %s0, 4
      %s19 = int_to_ptr.hbm [resolvable:$true] %s18
      %s20 = sshll.u32 [#allocation2], 4
      %s21 = int_to_ptr.vmem [resolvable:$true] %s20
      %26 = dma.hbm_to_vmem [thread:$0]  %s19, 256, %s21, [#allocation3], 128, 128, 8
    $region5: #{tpu_custom_call.1} parent=1 // pred_fallthru
      _
    // Predicated region
    $region6: #{tpu_custom_call.1} parent=1 // pred_check
      _
    $region7: #{tpu_custom_call.1} parent=1 // pred_check_branch
      %28 = sbr.rel (0) target = $region9
    $region8: #{tpu_custom_call.1} parent=1 // pred_region
      %30 = vsyncadd [#allocation6], 0
      %s32 = sshll.u32 %s1, 4
      %s33 = int_to_ptr.hbm [resolvable:$true] %s32
      %s34 = sshll.u32 [#allocation5], 4
      %s35 = int_to_ptr.vmem [resolvable:$true] %s34
      %37 = dma.hbm_to_vmem [thread:$0]  %s33, 16, %s35, [#allocation6]
    $region9: #{tpu_custom_call.1} parent=1 // pred_fallthru
      _
    // Predicated region
    $region10: #{tpu_custom_call.1} parent=1 // pred_check
      _
    $region11: #{tpu_custom_call.1} parent=1 // pred_check_branch
      %39 = sbr.rel (0) target = $region13
    $region12: #{tpu_custom_call.1} parent=1 // pred_region
      %41 = vsyncadd [#allocation6], 0
      %s43 = sshll.u32 %s2, 4
      %s44 = int_to_ptr.hbm [resolvable:$true] %s43
      %s45 = sshll.u32 [#allocation7], 4
      %s46 = int_to_ptr.vmem [resolvable:$true] %s45
      %48 = dma.hbm_to_vmem [thread:$0]  %s44, 32, %s46, [#allocation6]
    $region13: #{tpu_custom_call.1} parent=1 // pred_fallthru
      _
    // Predicated region
    $region14: #{tpu_custom_call.1} parent=1 // pred_check
      _
    $region15: #{tpu_custom_call.1} parent=1 // pred_check_branch
      %50 = sbr.rel (0) target = $region17
    $region16: #{tpu_custom_call.1} parent=1 // pred_region
      %52 = dma.done [#allocation3], 256
    $region17: #{tpu_custom_call.1} parent=1 // pred_fallthru
      _
    // Predicated region
    $region18: #{tpu_custom_call.1} parent=1 // pred_check
      _
    $region19: #{tpu_custom_call.1} parent=1 // pred_check_branch
      %54 = sbr.rel (0) target = $region21
    $region20: #{tpu_custom_call.1} parent=1 // pred_region
      %56 = dma.done [#allocation6], 16
    $region21: #{tpu_custom_call.1} parent=1 // pred_fallthru
      _
    // Predicated region
    $region22: #{tpu_custom_call.1} parent=1 // pred_check
      _
    $region23: #{tpu_custom_call.1} parent=1 // pred_check_branch
      %58 = sbr.rel (0) target = $region25
    $region24: #{tpu_custom_call.1} parent=1 // pred_region
      %60 = dma.done [#allocation6], 32
    $region25: #{tpu_custom_call.1} parent=1 // pred_fallthru
      _
    %v61 = vld [vmem:[#allocation2] sm:$0xff]
    %v62 = vld [vmem:[#allocation2 + $0x8] sm:$0xff]
    %v63 = vld [vmem:[#allocation5] sm:$0x1]
    %v65 = vperm.slane %v63, 0
    %v67 = vmul.f32 %v61, %v65
    %v68 = vmul.f32 %v62, %v65
    %vm69 = vcmask 261120
    %v70 = vsel %vm69, %v67, 0.0
    %71 = vadd.xlane.f32.xlu0 %v70
    %v72 = vpop.xlane.xlu0 %71
    %v73 = vsel %vm69, %v68, 0.0
    %74 = vadd.xlane.f32.xlu0 %v73
    %v75 = vpop.xlane.xlu0 %74
    %v76 = vld [vmem:[#allocation7] sm:$0x3]
    %vm77 = vcmp.eq.f32.partialorder %v76, 0.0
    %v80 = vlaneseq
    %v81 = vand.u32 %v80, 127
    %v82 = vperm.slane %v72, %v81
    %v83 = vperm.slane %v75, %v81
    %vm84 = vcmask 1041409
    %v85 = vsel %vm84, %v83, %v82
    %v87 = vsel %vm77, -inf, %v85
    %vm88 = vcmask 58368
    %v89 = vsel %vm88, %v87, -inf
    %90 = vmax.xlane.f32.xlu0 %v89
    %v91 = vpop.xlane.xlu0 %90
    %v92 = vsub.f32 %v87, %v91
    %v93 = vmul.f32 %v92, 1.442695
    %v94 = vpow.pop %v93
    %v95 = vsel %vm88, %v94, 0.0
    %96 = vadd.xlane.f32.xlu0 %v95
    %v97 = vpop.xlane.xlu0 %96
    %v98 = vrcp.pop %v97
    %v99 = vmul.f32 %v97, %v98
    %v100 = vsub.f32 2.0, %v99
    %v101 = vmul.f32 %v98, %v100
    %v102 = vmul.f32 %v94, %v101
    %v103 = vperm.slane %v102, 0
    %v104 = vlaneseq
    %v105 = vshrl.u32 %v104, 7
    %107 = vset.pattern.permute.xlu0 %v105
    %108 = vperm.xlu0 %107, %v103
    %v109 = vpop.permute.xlu0 %108
    %v110 = vperm.slane %v102, 1
    %v111 = vlaneseq
    %v112 = vshrl.u32 %v111, 7
    %114 = vset.pattern.permute.xlu0 %v112
    %115 = vperm.xlu0 %114, %v110
    %v116 = vpop.permute.xlu0 %115
    %v117 = vmul.f32 %v109, %v61
    %v118 = vmul.f32 %v116, %v62
    %v119 = vsel %vm69, %v117, 0.0
    %v120 = vrot.slane %v119, 4
    %v121 = vadd.f32 %v119, %v120
    %v122 = vrot.slane %v121, 2
    %v123 = vadd.f32 %v121, %v122
    %v124 = vrot.slane %v123, 1
    %v125 = vadd.f32 %v123, %v124
    %v126 = vsel %vm69, %v118, 0.0
    %v127 = vrot.slane %v126, 4
    %v128 = vadd.f32 %v126, %v127
    %v129 = vrot.slane %v128, 2
    %v130 = vadd.f32 %v128, %v129
    %v131 = vrot.slane %v130, 1
    %v132 = vadd.f32 %v130, %v131
    %v135 = vsel %vm84, %v132, %v125
    %vm137 = vcmask 254976
    %138 = vst.msk [vmem:[#allocation8] sm:$0x3] %vm137, %v135
    %139 = vst.msk [vmem:[#allocation9] sm:$0x3] %vm88, %v102
    // Predicated region
    $region26: #{tpu_custom_call.1} parent=1 // pred_check
      _
    $region27: #{tpu_custom_call.1} parent=1 // pred_check_branch
      %141 = sbr.rel (0) target = $region29
    $region28: #{tpu_custom_call.1} parent=1 // pred_region
      %143 = vsyncadd [#allocation4], 0
      %s145 = sshll.u32 [#allocation8], 4
      %s146 = int_to_ptr.vmem [resolvable:$true] %s145
      %s147 = sshll.u32 %s3, 4
      %s148 = int_to_ptr.hbm [resolvable:$true] %s147
      %150 = dma.vmem_to_hbm [thread:$0]  %s146, 32, %s148, [#allocation4]
    $region29: #{tpu_custom_call.1} parent=1 // pred_fallthru
      _
    // Predicated region
    $region30: #{tpu_custom_call.1} parent=1 // pred_check
      _
    $region31: #{tpu_custom_call.1} parent=1 // pred_check_branch
      %152 = sbr.rel (0) target = $region33
    $region32: #{tpu_custom_call.1} parent=1 // pred_region
      %154 = vsyncadd [#allocation10], 0
      %s156 = sshll.u32 [#allocation9], 4
      %s157 = int_to_ptr.vmem [resolvable:$true] %s156
      %s158 = sshll.u32 %s4, 4
      %s159 = int_to_ptr.hbm [resolvable:$true] %s158
      %161 = dma.vmem_to_hbm [thread:$0]  %s157, 32, %s159, [#allocation10]
    $region33: #{tpu_custom_call.1} parent=1 // pred_fallthru
      _
    // Predicated region
    $region34: #{tpu_custom_call.1} parent=1 // pred_check
      _
    $region35: #{tpu_custom_call.1} parent=1 // pred_check_branch
      %163 = sbr.rel (0) target = $region37
    $region36: #{tpu_custom_call.1} parent=1 // pred_region
      %165 = dma.done [#allocation4], 32
    $region37: #{tpu_custom_call.1} parent=1 // pred_fallthru
      _
    // Predicated region
    $region38: #{tpu_custom_call.1} parent=1 // pred_check
      _
    $region39: #{tpu_custom_call.1} parent=1 // pred_check_branch
      %167 = sbr.rel (0) target = $region41
    $region40: #{tpu_custom_call.1} parent=1 // pred_region
      %169 = dma.done [#allocation10], 32
    $region41: #{tpu_custom_call.1} parent=1 // pred_fallthru
      _
    %170 = vsyncpa [#allocation3], 1
    %171 = vsyncpa [#allocation6], 1
    %172 = vsyncpa [#allocation4], 1
    %173 = vsyncpa [#allocation10], 1

</llo_original>
